<compile_context>
chip_gen: v5e
topology: v5e:2x2
jax: 0.10.0
libtpu: 0.0.40
codegen_flags: <defaults>
</compile_context>

<pallas_src>
import jax
import jax.numpy as jnp
from jax import lax
from jax.experimental import pallas as pl
from jax.experimental.pallas import tpu as pltpu

K = 4          # kernel size
PAD = 1        # reflect padding
EPS = 1e-5     # InstanceNorm2d default eps
NEG_SLOPE = 0.2


def _convblock_kernel(x_ref, w_ref, o_ref):
    # x_ref : (1, K*K*C, S)  bf16 im2col patches for one image (S = Ho*Wo, lane-dense)
    # w_ref : (toc, K*K*C)   bf16 weight tile
    # o_ref : (1, toc, S)    f32 output tile (flat spatial; reshaped in wrapper)
    # Single deep matmul on the MXU (contraction = K*K*C), f32 accumulation.
    acc = jnp.dot(w_ref[...], x_ref[0], preferred_element_type=jnp.float32)  # (toc, S)

    # InstanceNorm2d (no affine): per-(n, oc) mean / biased variance over spatial.
    # (Conv bias is a per-channel constant -> exactly cancelled by mean subtraction.)
    mean = jnp.mean(acc, axis=1, keepdims=True)
    centered = acc - mean
    var = jnp.mean(centered * centered, axis=1, keepdims=True)
    y = centered * lax.rsqrt(var + EPS)

    # LeakyReLU(0.2)
    y = jnp.where(y >= 0.0, y, NEG_SLOPE * y)
    o_ref[0] = y.astype(o_ref.dtype)


def _pick_oc_tile(oc):
    # Tile OC so the per-step weight/output blocks stay small at large OC.
    if oc <= 128:
        return oc                      # one tile; block == full dim is always legal
    for t in (128, 64, 32, 16, 8):
        if oc % t == 0:
            return t
    return oc


def conv_block(x, weight, bias=None):
    """x: (N, C, H, W) f32, weight: (OC, C, K, K) f32.

    `bias` is accepted for API parity with the PyTorch module but ignored: with
    InstanceNorm2d (affine=False) right after the conv, a per-channel bias is
    exactly removed by the mean subtraction.
    """
    del bias
    N, C, H, W = x.shape
    OC = weight.shape[0]
    Ho = H + 2 * PAD - K + 1
    Wo = W + 2 * PAD - K + 1
    S = Ho * Wo
    KKC = K * K * C

    # Reflect padding (PyTorch padding_mode='reflect' == numpy 'reflect').
    x_pad = jnp.pad(x, ((0, 0), (0, 0), (PAD, PAD), (PAD, PAD)), mode="reflect")

    # Wrapper-side im2col: (N, K*K*C, Ho*Wo), tap-major / C-minor on axis 1,
    # lane-dense flat spatial on the last axis.
    taps = [x_pad[:, :, kh:kh + Ho, kw:kw + Wo] for kh in range(K) for kw in range(K)]
    im2col = jnp.stack(taps, axis=1).reshape(N, KKC, S).astype(jnp.bfloat16)

    # Weight re-laid to (OC, K*K*C) matching the im2col ordering: (oc, kh, kw, c).
    w2 = jnp.transpose(weight, (0, 2, 3, 1)).reshape(OC, KKC).astype(jnp.bfloat16)

    toc = _pick_oc_tile(OC)
    n_oc = OC // toc

    out_flat = pl.pallas_call(
        _convblock_kernel,
        out_shape=jax.ShapeDtypeStruct((N, OC, S), jnp.float32),
        grid_spec=pltpu.PrefetchScalarGridSpec(
            num_scalar_prefetch=0,
            grid=(N, n_oc),     # OC tiles innermost -> image block stays VMEM-resident
            in_specs=[
                pl.BlockSpec((1, KKC, S), lambda n, j: (n, 0, 0)),
                pl.BlockSpec((toc, KKC), lambda n, j: (j, 0)),
            ],
            out_specs=pl.BlockSpec((1, toc, S), lambda n, j: (n, j, 0)),
        ),
        compiler_params=pltpu.CompilerParams(
            dimension_semantics=("parallel", "parallel"),  # independent axes (v7x megacore)
            vmem_limit_bytes=32 * 1024 * 1024,
        ),
    )(im2col, w2)

    # TODO(synk): very large images would also want spatial tiling of S (InstanceNorm
    # reduction would then need a two-pass / accumulator scheme).
    return out_flat.reshape(N, OC, Ho, Wo)


def _reference(x, weight, bias):
    """Pure-JAX f32 reference mirroring the PyTorch module (bias included)."""
    x_pad = jnp.pad(x, ((0, 0), (0, 0), (PAD, PAD), (PAD, PAD)), mode="reflect")
    y = lax.conv_general_dilated(
        x_pad, weight, window_strides=(1, 1), padding="VALID",
        dimension_numbers=("NCHW", "OIHW", "NCHW"))
    y = y + bias.reshape(1, -1, 1, 1)
    mean = jnp.mean(y, axis=(2, 3), keepdims=True)
    var = jnp.mean((y - mean) ** 2, axis=(2, 3), keepdims=True)
    y = (y - mean) * lax.rsqrt(var + EPS)
    return jnp.where(y >= 0.0, y, NEG_SLOPE * y)


if __name__ == "__main__":
    key = jax.random.PRNGKey(0)
    kx, kw, kb = jax.random.split(key, 3)

    N, C, OC, H, W = 2, 4, 8, 16, 16
    x = jax.random.normal(kx, (N, C, H, W), jnp.float32)
    weight = jax.random.normal(kw, (OC, C, K, K), jnp.float32) * 0.1
    bias = jax.random.normal(kb, (OC,), jnp.float32) * 0.1

    out = conv_block(x, weight, bias)
    out = jax.block_until_ready(out)

    ref = _reference(x, weight, bias)
    assert out.shape == (N, OC, H - 1, W - 1), out.shape
    # bf16 matmul operands -> loosened tolerance vs. the f32 reference.
    assert jnp.allclose(out, ref, rtol=5e-2, atol=5e-2), \
        float(jnp.max(jnp.abs(out - ref)))

    print("KERNEL_OK")
</pallas_src>

<mosaic_0001>
module attributes {stable_mosaic.version = 11 : i64} {
  func.func @_convblock_kernel(%arg0: i32, %arg1: i32, %arg2: memref<1x64x225xbf16, #tpu.memory_space<vmem>>, %arg3: memref<8x64xbf16, #tpu.memory_space<vmem>>, %arg4: memref<1x8x225xf32, #tpu.memory_space<vmem>>) attributes {dimension_semantics = [#tpu.dimension_semantics<parallel>, #tpu.dimension_semantics<parallel>], iteration_bounds = array<i64: 2, 1>, scalar_prefetch = 0 : i64, scratch_operands = 0 : i64, tpu.core_type = #tpu.core_type<tc>, window_params = [{transform_indices = @transform_0, window_bounds = array<i64: 1, 64, 225>}, {transform_indices = @transform_1, window_bounds = array<i64: 8, 64>}, {transform_indices = @transform_2, window_bounds = array<i64: 1, 8, 225>}]} {
    %c0 = arith.constant 0 : index
    %c0_0 = arith.constant 0 : index
    %0 = vector.load %arg3[%c0, %c0_0] : memref<8x64xbf16, #tpu.memory_space<vmem>>, vector<8x64xbf16>
    %c0_1 = arith.constant 0 : index
    %c0_2 = arith.constant 0 : index
    %c0_3 = arith.constant 0 : index
    %1 = vector.load %arg2[%c0_1, %c0_2, %c0_3] : memref<1x64x225xbf16, #tpu.memory_space<vmem>>, vector<1x64x225xbf16>
    %2 = vector.shape_cast %1 : vector<1x64x225xbf16> to vector<64x225xbf16>
    %cst = arith.constant dense<0.000000e+00> : vector<8x225xf32>
    %3 = tpu.matmul %0, %2, %cst {dimension_numbers = #tpu.dot_dimension_numbers<[1], [0], [0], [1], [0, 0, 1, 1], [], []>} : vector<8x64xbf16>, vector<64x225xbf16>, vector<8x225xf32> -> vector<8x225xf32>
    %cst_4 = arith.constant dense<0.000000e+00> : vector<8xf32>
    %4 = vector.multi_reduction <add>, %3, %cst_4 [1] : vector<8x225xf32> to vector<8xf32>
    %5 = vector.shape_cast %4 : vector<8xf32> to vector<8x1xf32>
    %cst_5 = arith.constant 2.250000e+02 : f32
    %6 = vector.broadcast %cst_5 : f32 to vector<8x1xf32>
    %7 = arith.divf %5, %6 : vector<8x1xf32>
    %8 = vector.broadcast %7 : vector<8x1xf32> to vector<8x225xf32>
    %9 = arith.subf %3, %8 : vector<8x225xf32>
    %10 = arith.mulf %9, %9 : vector<8x225xf32>
    %cst_6 = arith.constant dense<0.000000e+00> : vector<8xf32>
    %11 = vector.multi_reduction <add>, %10, %cst_6 [1] : vector<8x225xf32> to vector<8xf32>
    %12 = vector.shape_cast %11 : vector<8xf32> to vector<8x1xf32>
    %cst_7 = arith.constant 2.250000e+02 : f32
    %13 = vector.broadcast %cst_7 : f32 to vector<8x1xf32>
    %14 = arith.divf %12, %13 : vector<8x1xf32>
    %cst_8 = arith.constant 9.99999974E-6 : f32
    %15 = vector.broadcast %cst_8 : f32 to vector<8x1xf32>
    %16 = arith.addf %14, %15 : vector<8x1xf32>
    %17 = math.rsqrt %16 : vector<8x1xf32>
    %18 = vector.broadcast %17 : vector<8x1xf32> to vector<8x225xf32>
    %19 = arith.mulf %9, %18 : vector<8x225xf32>
    %cst_9 = arith.constant 0.000000e+00 : f32
    %20 = vector.broadcast %cst_9 : f32 to vector<8x225xf32>
    %21 = arith.cmpf oge, %19, %20 : vector<8x225xf32>
    %cst_10 = arith.constant 2.000000e-01 : f32
    %22 = vector.broadcast %cst_10 : f32 to vector<8x225xf32>
    %23 = arith.mulf %22, %19 : vector<8x225xf32>
    %24 = arith.select %21, %19, %23 : vector<8x225xi1>, vector<8x225xf32>
    %c0_11 = arith.constant 0 : index
    %c0_12 = arith.constant 0 : index
    %c0_13 = arith.constant 0 : index
    %25 = vector.load %arg4[%c0_11, %c0_12, %c0_13] : memref<1x8x225xf32, #tpu.memory_space<vmem>>, vector<1x8x225xf32>
    %26 = vector.shape_cast %25 : vector<1x8x225xf32> to vector<8x225xf32>
    %27 = vector.shape_cast %24 : vector<8x225xf32> to vector<1x8x225xf32>
    tpu.vector_store %arg4[%c0_11, %c0_12, %c0_13], %27 {strides = array<i32>} : memref<1x8x225xf32, #tpu.memory_space<vmem>>, vector<1x8x225xf32>,
    return
  }
  func.func @transform_0(%arg0: i32, %arg1: i32) -> (i32, i32, i32) {
    %c0_i32 = arith.constant 0 : i32
    %c0_i32_0 = arith.constant 0 : i32
    %c0_i32_1 = arith.constant 0 : i32
    return %arg0, %c0_i32, %c0_i32_0 : i32, i32, i32
  }
  func.func @transform_1(%arg0: i32, %arg1: i32) -> (i32, i32) {
    %c0_i32 = arith.constant 0 : i32
    %c0_i32_0 = arith.constant 0 : i32
    return %arg1, %c0_i32 : i32, i32
  }
  func.func @transform_2(%arg0: i32, %arg1: i32) -> (i32, i32, i32) {
    %c0_i32 = arith.constant 0 : i32
    %c0_i32_0 = arith.constant 0 : i32
    return %arg0, %arg1, %c0_i32 : i32, i32, i32
  }
}

</mosaic_0001>

<llo_original>
// kernel: tpu_custom_call.1
$region0: #{tpu_custom_call.1}
  #allocation0 [shape = 'u32[]', space=smem, size = 0x4, offset = 0x4, fixed_abs, tag = 'smem constant byte address 0x4 - core index']
  #allocation1 [shape = 'u32[72,128]{1,0:T(1,128)}', space=vmem, size = 0x9000, scoped, tag = 'internal scratch']
  %s0 = inlined_call_operand.hbm [shape: bf16[2,64,225], index: 0, kind: input, shape index: {}]
  %s1 = inlined_call_operand.hbm [shape: bf16[8,64], index: 1, kind: input, shape index: {}]
  %s2 = inlined_call_operand.hbm [shape: f32[2,8,225], index: 2, kind: output, shape index: {}]
  %s3 = sld [smem:[#allocation0]]
  $region49: #{tpu_custom_call.1} parent=0
    _
  %s5 = ssub.s32 1, %s3
  %s6 = scalar_select 0, %s5, %s3
  $region1: #{tpu_custom_call.1} parent=0
    #allocation2 [shape = 'u8[65536]{0}', space=vmem, size = 0x10000, scoped, tag = 'input window, operand 0']
    #allocation3 [shape = 's32[2]{0}', space=sflag, size = 0x8, scoped, tag = 'scoped memory for tpu_custom_call.1']
    #allocation4 [shape = 's32[2]{0}', space=sflag, size = 0x8, scoped, tag = 'scoped memory for tpu_custom_call.1']
    #allocation5 [shape = 'u8[2048]{0}', space=vmem, size = 0x800, scoped, tag = 'input window, operand 1, single buffered']
    #allocation6 [shape = 's32[1]{0}', space=sflag, size = 0x4, scoped, tag = 'scoped memory for tpu_custom_call.1']
    #allocation7 [shape = 'u8[16384]{0}', space=vmem, size = 0x4000, scoped, tag = 'output window, operand 0']
    %7 = vsyncpa [#allocation3], 0
    %s8 = scalar_lea.sflag [#allocation3], 1
    %9 = vsyncpa %s8, 0
    %10 = vsyncpa [#allocation6], 0
    %11 = vsyncpa [#allocation4], 0
    %s12 = scalar_lea.sflag [#allocation4], 1
    %13 = vsyncpa %s12, 0
    loop: start=0, step=1, limit=4
    $region2: #{tpu_custom_call.1} parent=1 // loop_pre_header
      _
    $region3: #{tpu_custom_call.1} parent=1 // loop_header
      %s15 = sphi 0, %s19
      %p16 = scmp.ge.s32.totalorder %s15, 4
      %s22 = sphi 0, %s34
      %s23 = sphi 0, %s30
      %s24 = sphi 0, %s22
      %s25 = sphi 0, %s23
      %s26 = sphi 0, %s24
      %s27 = sphi 0, %s25
      %s37 = sphi 0, %s39
      %s40 = sphi 0, %s37
      %s41 = sphi 0, %s40
      %s57 = sphi 0, %s41
      %s63 = sphi 0, %s65
      %s66 = sphi 0, %s63
      %s67 = sphi 0, %s66
      %s83 = sphi 0, %s67
      %s91 = sphi 0, %s93
      %s94 = sphi 0, %s91
      %s95 = sphi 0, %s94
      %s111 = sphi 0, %s95
    $region4: #{tpu_custom_call.1} parent=1 // loop_header_branch
      %18 = sbr.rel (%p16) target = $region8
    $region5: #{tpu_custom_call.1} parent=1 // loop_body
      %s20 = ssub.s32 %s15, 1
      %s21 = ssub.s32 %s15, 2
      %s28 = sadd.s32 1, %s23
      %p29 = scmp.ge.s32.totalorder %s28, 1
      %s30 = scalar_select %p29, 0, %s28
      %s31 = sadd.s32 1, %s22
      %s32 = scalar_select %p29, %s31, %s22
      %p33 = scmp.ge.s32.totalorder %s32, 2
      %s34 = scalar_select %p33, 0, %s32
      %s35 = ssub.s32 %s22, %s34
      %p36 = scmp.eq.s32.totalorder %s35, 0
      %s38 = sadd.s32 %s37, 1
      %s39 = scalar_select %p36, %s37, %s38
      %p42 = pneg %p36
      %p43 = scmp.eq.s32.totalorder %s15, 1
      %p44 = por %p42, %p43
      %p45 = scmp.ne.s32.totalorder %s37, %s40
      %p46 = scmp.eq.s32.totalorder %s15, 0
      %p47 = por %p45, %p46
      %p48 = scmp.ne.s32.totalorder %s37, %s40
      %p49 = scmp.eq.s32.totalorder %s20, 1
      %p50 = por %p48, %p49
      %p51 = scmp.ne.s32.totalorder %s40, %s41
      %p52 = scmp.eq.s32.totalorder %s20, 0
      %p53 = por %p51, %p52
      %p54 = scmp.ne.s32.totalorder %s40, %s41
      %p55 = scmp.eq.s32.totalorder %s21, 1
      %p56 = por %p54, %p55
      %p58 = scmp.ne.s32.totalorder %s41, %s57
      %p59 = scmp.eq.s32.totalorder %s21, 0
      %p60 = por %p58, %p59
      %s61 = ssub.s32 %s23, %s30
      %p62 = scmp.eq.s32.totalorder %s61, 0
      %s64 = sadd.s32 %s63, 1
      %s65 = scalar_select %p62, %s63, %s64
      %p68 = pneg %p62
      %p69 = scmp.eq.s32.totalorder %s15, 1
      %p70 = por %p68, %p69
      %p71 = scmp.ne.s32.totalorder %s63, %s66
      %p72 = scmp.eq.s32.totalorder %s15, 0
      %p73 = por %p71, %p72
      %p74 = scmp.ne.s32.totalorder %s63, %s66
      %p75 = scmp.eq.s32.totalorder %s20, 1
      %p76 = por %p74, %p75
      %p77 = scmp.ne.s32.totalorder %s66, %s67
      %p78 = scmp.eq.s32.totalorder %s20, 0
      %p79 = por %p77, %p78
      %p80 = scmp.ne.s32.totalorder %s66, %s67
      %p81 = scmp.eq.s32.totalorder %s21, 1
      %p82 = por %p80, %p81
      %p84 = scmp.ne.s32.totalorder %s67, %s83
      %p85 = scmp.eq.s32.totalorder %s21, 0
      %p86 = por %p84, %p85
      %s87 = ssub.s32 %s22, %s34
      %s88 = ssub.s32 %s23, %s30
      %s89 = sor.u32 %s87, %s88
      %p90 = scmp.eq.s32.totalorder %s89, 0
      %s92 = sadd.s32 %s91, 1
      %s93 = scalar_select %p90, %s91, %s92
      %p96 = pneg %p90
      %p97 = scmp.eq.s32.totalorder %s15, 1
      %p98 = por %p96, %p97
      %p99 = scmp.ne.s32.totalorder %s91, %s94
      %p100 = scmp.eq.s32.totalorder %s15, 0
      %p101 = por %p99, %p100
      %p102 = scmp.ne.s32.totalorder %s91, %s94
      %p103 = scmp.eq.s32.totalorder %s20, 1
      %p104 = por %p102, %p103
      %p105 = scmp.ne.s32.totalorder %s94, %s95
      %p106 = scmp.eq.s32.totalorder %s20, 0
      %p107 = por %p105, %p106
      %p108 = scmp.ne.s32.totalorder %s94, %s95
      %p109 = scmp.eq.s32.totalorder %s21, 1
      %p110 = por %p108, %p109
      %p112 = scmp.ne.s32.totalorder %s95, %s111
      %p113 = scmp.eq.s32.totalorder %s21, 0
      %p114 = por %p112, %p113
      %p115 = scmp.le.s32.totalorder 1, %s15
      %p116 = scmp.lt.s32.totalorder %s15, 3
      %p117 = pnand %p115, %p116
      %p118 = pneg %p117
      // Predicated region
      $region9: #{tpu_custom_call.1} parent=5 // pred_check
        _
      $region10: #{tpu_custom_call.1} parent=5 // pred_check_branch
        %120 = sbr.rel (%p117) target = $region12
      $region11: #{tpu_custom_call.1} parent=5 // pred_region
        %s121 = ssub.s32 %s15, 1
        // Predicated region
        $region13: #{tpu_custom_call.1} parent=11 // pred_check
          %p122 = pneg %p79
        $region14: #{tpu_custom_call.1} parent=11 // pred_check_branch
          %124 = sbr.rel (%p122) target = $region16
        $region15: #{tpu_custom_call.1} parent=11 // pred_region
          %126 = vsyncadd [#allocation6], 0
          %s127 = smul.addr %s25, 4
          %s128 = scalar_lea.hbm %s1, %s127
          %s130 = sshll.u32 %s128, 4
          %s131 = int_to_ptr.hbm [resolvable:$true] %s130
          %s132 = sshll.u32 [#allocation5], 4
          %s133 = int_to_ptr.vmem [resolvable:$true] %s132
          %135 = dma.hbm_to_vmem [thread:$0]  %s131, 64, %s133, [#allocation6]
        $region16: #{tpu_custom_call.1} parent=11 // pred_fallthru
          _
      $region12: #{tpu_custom_call.1} parent=5 // pred_fallthru
        _
      %p136 = scmp.lt.s32.totalorder %s15, 2
      // Predicated region
      $region17: #{tpu_custom_call.1} parent=5 // pred_check
        %p137 = pneg %p136
      $region18: #{tpu_custom_call.1} parent=5 // pred_check_branch
        %139 = sbr.rel (%p137) target = $region20
      $region19: #{tpu_custom_call.1} parent=5 // pred_region
        // Predicated region
        $region21: #{tpu_custom_call.1} parent=19 // pred_check
          %p140 = pneg %p47
        $region22: #{tpu_custom_call.1} parent=19 // pred_check_branch
          %142 = sbr.rel (%p140) target = $region24
        $region23: #{tpu_custom_call.1} parent=19 // pred_region
          %s143 = sand.u32 %s37, 1
          %s144 = scalar_lea.sflag [#allocation3], %s143
          %s145 = sand.u32 %s37, 1
          %s146 = smul.addr %s145, 64
          %s147 = scalar_lea.vmem [#allocation2], %s146
          %149 = vsyncadd %s144, 0
          %s150 = smul.addr %s22, 16
          %s151 = smul.addr %s150, 4
          %s152 = scalar_lea.hbm %s0, %s151
          %s153 = sshll.u32 %s152, 4
          %s154 = int_to_ptr.hbm [resolvable:$true] %s153
          %s155 = sshll.u32 %s147, 4
          %s156 = int_to_ptr.vmem [resolvable:$true] %s155
          %161 = dma.hbm_to_vmem [thread:$0]  %s154, 1024, %s156, %s144, 128, 128, 8
        $region24: #{tpu_custom_call.1} parent=19 // pred_fallthru
          _
      $region20: #{tpu_custom_call.1} parent=5 // pred_fallthru
        _
      %p162 = scmp.le.s32.totalorder 1, %s15
      %p163 = scmp.lt.s32.totalorder %s15, 3
      %p164 = pnand %p162, %p163
      %p165 = pneg %p164
      // Predicated region
      $region25: #{tpu_custom_call.1} parent=5 // pred_check
        _
      $region26: #{tpu_custom_call.1} parent=5 // pred_check_branch
        %167 = sbr.rel (%p164) target = $region28
      $region27: #{tpu_custom_call.1} parent=5 // pred_region
        %s168 = ssub.s32 %s15, 1
        %s169 = sand.u32 %s40, 1
        %s170 = scalar_lea.sflag [#allocation3], %s169
        %s171 = sand.u32 %s40, 1
        %s172 = smul.addr %s171, 64
        %s173 = scalar_lea.vmem [#allocation2], %s172
        // Predicated region
        $region29: #{tpu_custom_call.1} parent=27 // pred_check
          %p174 = pneg %p53
        $region30: #{tpu_custom_call.1} parent=27 // pred_check_branch
          %176 = sbr.rel (%p174) target = $region32
        $region31: #{tpu_custom_call.1} parent=27 // pred_region
          %178 = dma.done %s170, 1024
        $region32: #{tpu_custom_call.1} parent=27 // pred_fallthru
          _
        // Predicated region
        $region33: #{tpu_custom_call.1} parent=27 // pred_check
          %p179 = pneg %p79
        $region34: #{tpu_custom_call.1} parent=27 // pred_check_branch
          %181 = sbr.rel (%p179) target = $region36
        $region35: #{tpu_custom_call.1} parent=27 // pred_region
          %183 = dma.done [#allocation6], 64
        $region36: #{tpu_custom_call.1} parent=27 // pred_fallthru
          _
        %s184 = sand.u32 %s40, 1
        %s185 = scalar_lea.sflag [#allocation3], %s184
        %s186 = sand.u32 %s40, 1
        %s187 = smul.addr %s186, 64
        %s188 = scalar_lea.vmem [#allocation2], %s187
        %p189 = pneg %p53
        %p190 = pneg %p50
        %p191 = pneg %p79
        %p192 = pneg %p76
        %p193 = pneg %p107
        %p194 = pneg %p104
        %s195 = sand.u32 %s94, 1
        %s196 = scalar_lea.sflag [#allocation4], %s195
        %s197 = sand.u32 %s94, 1
        %s198 = smul.addr %s197, 16
        %s199 = scalar_lea.vmem [#allocation7], %s198
        %v201 = vld [vmem:[#allocation5] sm:$0xf]
        %v202 = vld [vmem:[%s173] sm:$0xff]
        %v203 = vld [vmem:[%s173 + $0x8] sm:$0xff]
        %v204 = vld [vmem:[%s173 + $0x10] sm:$0xff]
        %v205 = vld [vmem:[%s173 + $0x18] sm:$0xff]
        %v206 = vld [vmem:[%s173 + $0x20] sm:$0xff]
        %v207 = vld [vmem:[%s173 + $0x28] sm:$0xff]
        %v208 = vld [vmem:[%s173 + $0x30] sm:$0xff]
        %v209 = vld [vmem:[%s173 + $0x38] sm:$0xff]
        %v218 = vunpack.c.l.b16 %v202
        %v219 = vunpack.c.h.b16 %v202
        %v220 = vunpack.c.l.b16 %v203
        %v221 = vunpack.c.h.b16 %v203
        %v222 = vunpack.c.l.b16 %v204
        %v223 = vunpack.c.h.b16 %v204
        %v224 = vunpack.c.l.b16 %v205
        %v225 = vunpack.c.h.b16 %v205
        %v226 = vunpack.c.l.b16 %v206
        %v227 = vunpack.c.h.b16 %v206
        %v228 = vunpack.c.l.b16 %v207
        %v229 = vunpack.c.h.b16 %v207
        %v230 = vunpack.c.l.b16 %v208
        %v231 = vunpack.c.h.b16 %v208
        %v232 = vunpack.c.l.b16 %v209
        %v233 = vunpack.c.h.b16 %v209
        %v234 = vpack.c.b16 %v220, %v218
        %v235 = vpack.c.b16 %v221, %v219
        %v236 = vpack.c.b16 %v224, %v222
        %v237 = vpack.c.b16 %v225, %v223
        %v238 = vpack.c.b16 %v228, %v226
        %v239 = vpack.c.b16 %v229, %v227
        %v240 = vpack.c.b16 %v232, %v230
        %v241 = vpack.c.b16 %v233, %v231
        %vm250 = vcmask 523264
        %v252 = vsel %vm250, %v201, 0
        %254 = vmatpush.bf16.msra.mxu0 0
        %255 = vmatpush.bf16.msra.mxu0 0
        %256 = vmatpush.bf16.msra.mxu0 0
        %257 = vmatpush.bf16.msra.mxu0 0
        %258 = vmatpush.bf16.msra.mxu0 %v240
        %259 = vmatpush.bf16.msra.mxu0 %v238
        %260 = vmatpush.bf16.msra.mxu0 %v236
        %261 = vmatpush.bf16.msra.mxu0 %v234
        %262 = vmatmul.bf16.gmra.mxu0 %v252
        %v263 = vpop.f32.mrf.mxu0
        %v264 = vadd.f32 0.0, %v263
        %v265 = vpop.f32.mrf.mxu0
        %266 = vdwg.mxu0
        %267 = vmatpush.bf16.msra.mxu0 0
        %268 = vmatpush.bf16.msra.mxu0 0
        %269 = vmatpush.bf16.msra.mxu0 0
        %270 = vmatpush.bf16.msra.mxu0 0
        %271 = vmatpush.bf16.msra.mxu0 %v241
        %272 = vmatpush.bf16.msra.mxu0 %v239
        %273 = vmatpush.bf16.msra.mxu0 %v237
        %274 = vmatpush.bf16.msra.mxu0 %v235
        %275 = vmatmul.bf16.gmra.mxu0 %v252
        %v276 = vpop.f32.mrf.mxu0
        %v277 = vadd.f32 0.0, %v276
        %v278 = vpop.f32.mrf.mxu0
        %279 = vdwg.mxu0
        %vm280 = vcmask 793600
        %v281 = vsel %vm280, %v277, 0.0
        %v282 = vadd.f32 %v264, %v281
        %283 = vadd.xlane.f32.xlu0 %v282
        %v284 = vpop.xlane.xlu0 %283
        %v285 = vrcp.pop 225.0
        %v286 = vmul.f32 225.0, %v285
        %v287 = vsub.f32 1.0, %v286
        %v288 = vmul.f32 %v285, %v287
        %v289 = vadd.f32 %v285, %v288
        %vm290 = vweird.f32 %v285
        %v291 = vsel %vm290, %v285, %v289
        %v292 = vmul.f32 %v284, %v291
        %v293 = vsub.f32 %v264, %v292
        %v294 = vsub.f32 %v277, %v292
        %v295 = vmul.f32 %v293, %v293
        %v296 = vmul.f32 %v294, %v294
        %v297 = vsel %vm280, %v296, 0.0
        %v298 = vadd.f32 %v295, %v297
        %299 = vadd.xlane.f32.xlu0 %v298
        %v300 = vpop.xlane.xlu0 %299
        %v301 = vmul.f32 %v300, %v291
        %v302 = vadd.f32 %v301, 1e-05
        %v303 = vrsqrt.pop %v302
        %v304 = vmul.f32 %v303, %v302
        %v305 = vmul.f32 %v304, %v303
        %v306 = vmul.f32 0.5, %v305
        %v307 = vsub.f32 1.5, %v306
        %v308 = vmul.f32 %v303, %v307
        %vm309 = vweird.f32 %v302
        %vm310 = vweird.f32 %v303
        %vm311 = vmor %vm309, %vm310
        %v312 = vsel %vm311, %v303, %v308
        %v313 = vmul.f32 %v293, %v312
        %v314 = vmul.f32 %v294, %v312
        %vm315 = vcmp.ge.f32.partialorder %v313, 0.0
        %vm316 = vcmp.ge.f32.partialorder %v314, 0.0
        %v317 = vmul.f32 %v313, 0.2
        %v318 = vmul.f32 %v314, 0.2
        %v319 = vsel %vm315, %v313, %v317
        %v320 = vsel %vm316, %v314, %v318
        %321 = vst [vmem:[%s199] sm:$0xff] %v319
        %322 = vst.msk [vmem:[%s199 + $0x8] sm:$0xff] %vm280, %v320
        %s323 = sand.u32 %s94, 1
        %s324 = scalar_lea.sflag [#allocation4], %s323
        %s325 = sand.u32 %s94, 1
        %s326 = smul.addr %s325, 16
        %s327 = scalar_lea.vmem [#allocation7], %s326
        // Predicated region
        $region37: #{tpu_custom_call.1} parent=27 // pred_check
          %p328 = pneg %p104
        $region38: #{tpu_custom_call.1} parent=27 // pred_check_branch
          %330 = sbr.rel (%p328) target = $region40
        $region39: #{tpu_custom_call.1} parent=27 // pred_region
          %332 = vsyncadd %s324, 0
          %s333 = smul.addr %s25, 2
          %s334 = smul.addr %s24, 2
          %s335 = sadd.s32 %s333, %s334
          %s336 = smul.addr %s335, 8
          %s337 = scalar_lea.hbm %s2, %s336
          %s339 = sshll.u32 %s327, 4
          %s340 = int_to_ptr.vmem [resolvable:$true] %s339
          %s341 = sshll.u32 %s337, 4
          %s342 = int_to_ptr.hbm [resolvable:$true] %s341
          %344 = dma.vmem_to_hbm [thread:$0]  %s340, 256, %s342, %s324
        $region40: #{tpu_custom_call.1} parent=27 // pred_fallthru
          _
      $region28: #{tpu_custom_call.1} parent=5 // pred_fallthru
        _
      %p345 = scmp.le.s32.totalorder 2, %s15
      // Predicated region
      $region41: #{tpu_custom_call.1} parent=5 // pred_check
        %p346 = pneg %p345
      $region42: #{tpu_custom_call.1} parent=5 // pred_check_branch
        %348 = sbr.rel (%p346) target = $region44
      $region43: #{tpu_custom_call.1} parent=5 // pred_region
        %s349 = ssub.s32 %s15, 2
        // Predicated region
        $region45: #{tpu_custom_call.1} parent=43 // pred_check
          %p350 = pneg %p110
        $region46: #{tpu_custom_call.1} parent=43 // pred_check_branch
          %352 = sbr.rel (%p350) target = $region48
        $region47: #{tpu_custom_call.1} parent=43 // pred_region
          %s353 = sand.u32 %s95, 1
          %s354 = scalar_lea.sflag [#allocation4], %s353
          %s355 = sand.u32 %s95, 1
          %s356 = smul.addr %s355, 16
          %s357 = scalar_lea.vmem [#allocation7], %s356
          %359 = dma.done %s354, 256
        $region48: #{tpu_custom_call.1} parent=43 // pred_fallthru
          _
      $region44: #{tpu_custom_call.1} parent=5 // pred_fallthru
        _
    $region6: #{tpu_custom_call.1} parent=1 // loop_footer
      %s19 = sadd.s32 1, %s15
    $region7: #{tpu_custom_call.1} parent=1 // loop_footer_branch
      %14 = sbr.rel target = $region3
    $region8: #{tpu_custom_call.1} parent=1 // loop_exit
      _
    %360 = vsyncpa [#allocation3], 1
    %s361 = scalar_lea.sflag [#allocation3], 1
    %362 = vsyncpa %s361, 1
    %363 = vsyncpa [#allocation6], 1
    %364 = vsyncpa [#allocation4], 1
    %s365 = scalar_lea.sflag [#allocation4], 1
    %366 = vsyncpa %s365, 1

</llo_original>
